<compile_context>
chip_gen: v7x
topology: tpu7x:2x2x1
jax: 0.10.0
libtpu: 0.0.40
codegen_flags: <defaults>
</compile_context>

<pallas_src>
import functools

import jax
import jax.numpy as jnp
import numpy as np
from jax.experimental import pallas as pl
from jax.experimental.pallas import tpu as pltpu

LANE = 128


def _round_up(x, m):
    return ((x + m - 1) // m) * m


# ---------------------------------------------------------------------------
# Single fused kernel: per batch element b it computes
#   diff (tree|graph) -> z_mean/z_log_var -> kl_b -> z -> bz = z@W2 + b
#   out_tree  = relu(x_tree  @ W1_t + bz_tree )   (128-lane padded)
#   out_graph = relu(x_graph @ W1_g + bz_graph)   (128-lane padded)
# ---------------------------------------------------------------------------
def _fused_kernel(xt_ref, yt_ref, xg_ref, yg_ref, eps_ref,
                  wmv_ref, bmv_ref, w1t_ref, w1g_ref, w2b_ref, bf_ref,
                  out_t_ref, out_g_ref, kl_ref):
    f32 = jnp.float32

    xt = xt_ref[...].astype(f32)            # (Nt, H)
    yt = yt_ref[...].astype(f32)            # (Nt, H)
    xg = xg_ref[...].astype(f32)            # (Ng, H)
    yg = yg_ref[...].astype(f32)            # (Ng, H)

    # Sequence sums (sublane reduce), then lane-concat tree|graph -> (1, 2H).
    diff_t = jnp.sum(yt - xt, axis=0, keepdims=True)
    diff_g = jnp.sum(yg - xg, axis=0, keepdims=True)
    diff = jnp.concatenate([diff_t, diff_g], axis=1)

    # One MXU push through the block-diagonal [T_mean|G_mean|T_var|G_var].
    p = jnp.dot(diff, wmv_ref[...], preferred_element_type=f32) + bmv_ref[...]
    two_l = p.shape[1] // 2
    z_mean = p[:, :two_l]                    # (1, 2L)  [tree | graph]
    z_log_var = -jnp.abs(p[:, two_l:])       # (1, 2L)  [tree | graph]

    e = jnp.exp(0.5 * z_log_var)             # single EUP exp; exp(zlv) = e*e
    kl_b = -0.5 * jnp.sum(1.0 + z_log_var - z_mean * z_mean - e * e)
    z = z_mean + e * eps_ref[...]            # (1, 2L)  [z_tree | z_graph]

    # Both branches' z@W2 in one dot, bias pre-folded -> single broadcast-add.
    bz = jnp.dot(z, w2b_ref[...], preferred_element_type=f32) + bf_ref[...]
    hp = bz.shape[1] // 2
    bz_t = bz[:, :hp]                        # (1, HP)
    bz_g = bz[:, hp:]                        # (1, HP)

    # x @ W1 with output columns zero-padded to a dense 128-lane slab.
    p1_t = jnp.dot(xt, w1t_ref[...], preferred_element_type=f32)   # (Nt, HP)
    p1_g = jnp.dot(xg, w1g_ref[...], preferred_element_type=f32)   # (Ng, HP)

    out_t_ref[...] = jnp.maximum(p1_t + bz_t, 0.0).astype(out_t_ref.dtype)
    out_g_ref[...] = jnp.maximum(p1_g + bz_g, 0.0).astype(out_g_ref.dtype)
    # Lane-dense scalar row (avoids a masked (1,1) VMEM store); wrapper sums.
    kl_ref[...] = jnp.broadcast_to(kl_b, kl_ref.shape).astype(kl_ref.dtype)


# ---------------------------------------------------------------------------
# HierVGNN-level forward (post-encoder part)
# ---------------------------------------------------------------------------
def hier_vgnn_forward(params, x_tree, x_graph, y_tree, y_graph,
                      eps_tree, eps_graph, beta):
    B, Nt, H = x_tree.shape
    _, Ng, _ = x_graph.shape
    L = params["T_mean_w"].shape[1]
    HP = _round_up(H, LANE)                  # lane-dense padded output width
    f32 = jnp.float32

    # --- pack weights (tiny, host/XLA-side layout plumbing) ----------------
    zl = jnp.zeros((H, L), f32)
    w_mv = jnp.concatenate([
        jnp.concatenate([params["T_mean_w"], zl, params["T_var_w"], zl], axis=1),
        jnp.concatenate([zl, params["G_mean_w"], zl, params["G_var_w"]], axis=1),
    ], axis=0)                                                   # (2H, 4L)
    b_mv = jnp.concatenate([params["T_mean_b"], params["G_mean_b"],
                            params["T_var_b"], params["G_var_b"]], axis=1)  # (1, 4L)

    def pad_cols(w):
        return jnp.pad(w, ((0, 0), (0, HP - w.shape[1])))

    w1_t = pad_cols(params["W_tree_w"][:H])                      # (H, HP)
    w1_g = pad_cols(params["W_graph_w"][:H])                     # (H, HP)
    w2_t = pad_cols(params["W_tree_w"][H:])                      # (L, HP)
    w2_g = pad_cols(params["W_graph_w"][H:])                     # (L, HP)
    zlh = jnp.zeros((L, HP), f32)
    w2b = jnp.concatenate([
        jnp.concatenate([w2_t, zlh], axis=1),
        jnp.concatenate([zlh, w2_g], axis=1),
    ], axis=0)                                                   # (2L, 2HP)
    b_fuse = jnp.concatenate([pad_cols(params["W_tree_b"]),
                              pad_cols(params["W_graph_b"])], axis=1)  # (1, 2HP)

    eps = jnp.concatenate([eps_tree, eps_graph], axis=1)[:, None, :]   # (B,1,2L)

    out_t, out_g, kl_rows = pl.pallas_call(
        _fused_kernel,
        grid=(B,),
        in_specs=[
            pl.BlockSpec((None, Nt, H), lambda b: (b, 0, 0)),    # x_tree
            pl.BlockSpec((None, Nt, H), lambda b: (b, 0, 0)),    # y_tree
            pl.BlockSpec((None, Ng, H), lambda b: (b, 0, 0)),    # x_graph
            pl.BlockSpec((None, Ng, H), lambda b: (b, 0, 0)),    # y_graph
            pl.BlockSpec((None, 1, 2 * L), lambda b: (b, 0, 0)), # eps
            pl.BlockSpec((2 * H, 4 * L), lambda b: (0, 0)),      # w_mv
            pl.BlockSpec((1, 4 * L), lambda b: (0, 0)),          # b_mv
            pl.BlockSpec((H, HP), lambda b: (0, 0)),             # w1_t
            pl.BlockSpec((H, HP), lambda b: (0, 0)),             # w1_g
            pl.BlockSpec((2 * L, 2 * HP), lambda b: (0, 0)),     # w2b
            pl.BlockSpec((1, 2 * HP), lambda b: (0, 0)),         # b_fuse
        ],
        out_specs=[
            pl.BlockSpec((None, Nt, HP), lambda b: (b, 0, 0)),
            pl.BlockSpec((None, Ng, HP), lambda b: (b, 0, 0)),
            pl.BlockSpec((None, 1, HP), lambda b: (b, 0, 0)),
        ],
        out_shape=[
            jax.ShapeDtypeStruct((B, Nt, HP), f32),
            jax.ShapeDtypeStruct((B, Ng, HP), f32),
            jax.ShapeDtypeStruct((B, 1, HP), f32),
        ],
        compiler_params=pltpu.CompilerParams(
            dimension_semantics=("parallel",)),
    )(x_tree, y_tree, x_graph, y_graph, eps,
      w_mv, b_mv, w1_t, w1_g, w2b, b_fuse)

    kl_div = jnp.sum(kl_rows[:, 0, 0]) / B
    x_tree_out = out_t[:, :, :H]
    x_graph_out = out_g[:, :, :H]
    # TODO(synk): decoder loss `loss + beta * kl_div` requires HierMPNDecoder.
    return x_tree_out, x_graph_out, kl_div


# ---------------------------------------------------------------------------
# Pure-JAX reference (same math) for verification
# ---------------------------------------------------------------------------
def _ref_rsample(x, y, wm, bm, wv, bv, eps):
    diff = y.sum(1) - x.sum(1)
    zm = diff @ wm + bm
    zlv = -jnp.abs(diff @ wv + bv)
    kl = -0.5 * jnp.sum(1.0 + zlv - zm * zm - jnp.exp(zlv)) / x.shape[0]
    return zm + jnp.exp(0.5 * zlv) * eps, kl


def _ref_fuse(x, z, w, b):
    zb = jnp.broadcast_to(z[:, None, :], (x.shape[0], x.shape[1], z.shape[1]))
    cat = jnp.concatenate([x, zb], axis=-1)
    return jax.nn.relu(cat @ w + b)


def reference_forward(params, x_tree, x_graph, y_tree, y_graph,
                      eps_tree, eps_graph, beta):
    dt, tkl = _ref_rsample(x_tree, y_tree, params["T_mean_w"],
                           params["T_mean_b"], params["T_var_w"],
                           params["T_var_b"], eps_tree)
    dg, gkl = _ref_rsample(x_graph, y_graph, params["G_mean_w"],
                           params["G_mean_b"], params["G_var_w"],
                           params["G_var_b"], eps_graph)
    return (_ref_fuse(x_tree, dt, params["W_tree_w"], params["W_tree_b"]),
            _ref_fuse(x_graph, dg, params["W_graph_w"], params["W_graph_b"]),
            tkl + gkl)


def init_params(key, hidden, latent):
    def linear(k, fan_in, fan_out):
        k1, k2 = jax.random.split(k)
        bound = 1.0 / np.sqrt(fan_in)
        w = jax.random.uniform(k1, (fan_in, fan_out), jnp.float32,
                               -bound, bound)
        b = jax.random.uniform(k2, (1, fan_out), jnp.float32, -bound, bound)
        return w, b

    ks = jax.random.split(key, 6)
    p = {}
    p["T_mean_w"], p["T_mean_b"] = linear(ks[0], hidden, latent)
    p["T_var_w"], p["T_var_b"] = linear(ks[1], hidden, latent)
    p["G_mean_w"], p["G_mean_b"] = linear(ks[2], hidden, latent)
    p["G_var_w"], p["G_var_b"] = linear(ks[3], hidden, latent)
    p["W_tree_w"], p["W_tree_b"] = linear(ks[4], hidden + latent, hidden)
    p["W_graph_w"], p["W_graph_b"] = linear(ks[5], hidden + latent, hidden)
    return p


if __name__ == "__main__":
    B, N_TREE, N_GRAPH, HIDDEN, LATENT = 2, 8, 12, 32, 16
    key = jax.random.PRNGKey(0)
    k_p, k_xt, k_xg, k_yt, k_yg, k_et, k_eg = jax.random.split(key, 7)

    params = init_params(k_p, HIDDEN, LATENT)
    x_tree = jax.random.normal(k_xt, (B, N_TREE, HIDDEN), jnp.float32)
    x_graph = jax.random.normal(k_xg, (B, N_GRAPH, HIDDEN), jnp.float32)
    y_tree = jax.random.normal(k_yt, (B, N_TREE, HIDDEN), jnp.float32)
    y_graph = jax.random.normal(k_yg, (B, N_GRAPH, HIDDEN), jnp.float32)
    eps_tree = jax.random.normal(k_et, (B, LATENT), jnp.float32)
    eps_graph = jax.random.normal(k_eg, (B, LATENT), jnp.float32)
    beta = 0.1

    fwd = jax.jit(functools.partial(hier_vgnn_forward, params))
    xt_out, xg_out, kl = fwd(x_tree, x_graph, y_tree, y_graph,
                             eps_tree, eps_graph, beta)
    jax.block_until_ready((xt_out, xg_out, kl))

    rt_out, rg_out, rkl = reference_forward(params, x_tree, x_graph, y_tree,
                                            y_graph, eps_tree, eps_graph, beta)
    np.testing.assert_allclose(np.asarray(xt_out), np.asarray(rt_out),
                               rtol=1e-4, atol=1e-4)
    np.testing.assert_allclose(np.asarray(xg_out), np.asarray(rg_out),
                               rtol=1e-4, atol=1e-4)
    np.testing.assert_allclose(float(kl), float(rkl), rtol=1e-4, atol=1e-4)

    print("KERNEL_OK")
</pallas_src>

<mosaic_0001>
module attributes {stable_mosaic.version = 11 : i64} {
  func.func @_fused_kernel(%arg0: i32, %arg1: memref<1x8x32xf32, #tpu.memory_space<vmem>>, %arg2: memref<1x8x32xf32, #tpu.memory_space<vmem>>, %arg3: memref<1x12x32xf32, #tpu.memory_space<vmem>>, %arg4: memref<1x12x32xf32, #tpu.memory_space<vmem>>, %arg5: memref<1x1x32xf32, #tpu.memory_space<vmem>>, %arg6: memref<64x64xf32, #tpu.memory_space<vmem>>, %arg7: memref<1x64xf32, #tpu.memory_space<vmem>>, %arg8: memref<32x128xf32, #tpu.memory_space<vmem>>, %arg9: memref<32x128xf32, #tpu.memory_space<vmem>>, %arg10: memref<32x256xf32, #tpu.memory_space<vmem>>, %arg11: memref<1x256xf32, #tpu.memory_space<vmem>>, %arg12: memref<1x8x128xf32, #tpu.memory_space<vmem>>, %arg13: memref<1x12x128xf32, #tpu.memory_space<vmem>>, %arg14: memref<1x1x128xf32, #tpu.memory_space<vmem>>) attributes {dimension_semantics = [#tpu.dimension_semantics<parallel>], iteration_bounds = array<i64: 2>, scalar_prefetch = 0 : i64, scratch_operands = 0 : i64, tpu.core_type = #tpu.core_type<tc>, window_params = [{transform_indices = @transform_0, window_bounds = array<i64: 1, 8, 32>}, {transform_indices = @transform_1, window_bounds = array<i64: 1, 8, 32>}, {transform_indices = @transform_2, window_bounds = array<i64: 1, 12, 32>}, {transform_indices = @transform_3, window_bounds = array<i64: 1, 12, 32>}, {transform_indices = @transform_4, window_bounds = array<i64: 1, 1, 32>}, {pipeline_mode = #tpu.pipeline_mode<synchronous>, transform_indices = @transform_5, window_bounds = array<i64: 64, 64>}, {pipeline_mode = #tpu.pipeline_mode<synchronous>, transform_indices = @transform_6, window_bounds = array<i64: 1, 64>}, {pipeline_mode = #tpu.pipeline_mode<synchronous>, transform_indices = @transform_7, window_bounds = array<i64: 32, 128>}, {pipeline_mode = #tpu.pipeline_mode<synchronous>, transform_indices = @transform_8, window_bounds = array<i64: 32, 128>}, {pipeline_mode = #tpu.pipeline_mode<synchronous>, transform_indices = @transform_9, window_bounds = array<i64: 32, 256>}, {pipeline_mode = #tpu.pipeline_mode<synchronous>, transform_indices = @transform_10, window_bounds = array<i64: 1, 256>}, {transform_indices = @transform_11, window_bounds = array<i64: 1, 8, 128>}, {transform_indices = @transform_12, window_bounds = array<i64: 1, 12, 128>}, {transform_indices = @transform_13, window_bounds = array<i64: 1, 1, 128>}]} {
    %c0 = arith.constant 0 : index
    %c0_0 = arith.constant 0 : index
    %c0_1 = arith.constant 0 : index
    %0 = vector.load %arg1[%c0, %c0_0, %c0_1] : memref<1x8x32xf32, #tpu.memory_space<vmem>>, vector<1x8x32xf32>
    %1 = vector.shape_cast %0 : vector<1x8x32xf32> to vector<8x32xf32>
    %c0_2 = arith.constant 0 : index
    %c0_3 = arith.constant 0 : index
    %c0_4 = arith.constant 0 : index
    %2 = vector.load %arg2[%c0_2, %c0_3, %c0_4] : memref<1x8x32xf32, #tpu.memory_space<vmem>>, vector<1x8x32xf32>
    %3 = vector.shape_cast %2 : vector<1x8x32xf32> to vector<8x32xf32>
    %c0_5 = arith.constant 0 : index
    %c0_6 = arith.constant 0 : index
    %c0_7 = arith.constant 0 : index
    %4 = vector.load %arg3[%c0_5, %c0_6, %c0_7] : memref<1x12x32xf32, #tpu.memory_space<vmem>>, vector<1x12x32xf32>
    %5 = vector.shape_cast %4 : vector<1x12x32xf32> to vector<12x32xf32>
    %c0_8 = arith.constant 0 : index
    %c0_9 = arith.constant 0 : index
    %c0_10 = arith.constant 0 : index
    %6 = vector.load %arg4[%c0_8, %c0_9, %c0_10] : memref<1x12x32xf32, #tpu.memory_space<vmem>>, vector<1x12x32xf32>
    %7 = vector.shape_cast %6 : vector<1x12x32xf32> to vector<12x32xf32>
    %8 = arith.subf %3, %1 : vector<8x32xf32>
    %cst = arith.constant dense<0.000000e+00> : vector<32xf32>
    %9 = vector.multi_reduction <add>, %8, %cst [0] : vector<8x32xf32> to vector<32xf32>
    %10 = vector.shape_cast %9 : vector<32xf32> to vector<1x32xf32>
    %11 = arith.subf %7, %5 : vector<12x32xf32>
    %cst_11 = arith.constant dense<0.000000e+00> : vector<32xf32>
    %12 = vector.multi_reduction <add>, %11, %cst_11 [0] : vector<12x32xf32> to vector<32xf32>
    %13 = vector.shape_cast %12 : vector<32xf32> to vector<1x32xf32>
    %14 = tpu.concatenate %10, %13 in 1 : vector<1x32xf32>, vector<1x32xf32> -> vector<1x64xf32>
    %c0_12 = arith.constant 0 : index
    %c0_13 = arith.constant 0 : index
    %15 = vector.load %arg6[%c0_12, %c0_13] : memref<64x64xf32, #tpu.memory_space<vmem>>, vector<64x64xf32>
    %cst_14 = arith.constant dense<0.000000e+00> : vector<1x64xf32>
    %16 = tpu.matmul %14, %15, %cst_14 {dimension_numbers = #tpu.dot_dimension_numbers<[1], [0], [0], [1], [0, 0, 1, 1], [], []>} : vector<1x64xf32>, vector<64x64xf32>, vector<1x64xf32> -> vector<1x64xf32>
    %c0_15 = arith.constant 0 : index
    %c0_16 = arith.constant 0 : index
    %17 = vector.load %arg7[%c0_15, %c0_16] : memref<1x64xf32, #tpu.memory_space<vmem>>, vector<1x64xf32>
    %18 = arith.addf %16, %17 : vector<1x64xf32>
    %19 = vector.extract_strided_slice %18 {offsets = [0, 0], sizes = [1, 32], strides = [1, 1]} : vector<1x64xf32> to vector<1x32xf32>
    %20 = vector.extract_strided_slice %18 {offsets = [0, 32], sizes = [1, 32], strides = [1, 1]} : vector<1x64xf32> to vector<1x32xf32>
    %21 = math.absf %20 : vector<1x32xf32>
    %cst_17 = arith.constant 0.000000e+00 : f32
    %22 = vector.broadcast %cst_17 : f32 to vector<1x32xf32>
    %23 = arith.subf %22, %21 : vector<1x32xf32>
    %cst_18 = arith.constant 5.000000e-01 : f32
    %24 = vector.broadcast %cst_18 : f32 to vector<1x32xf32>
    %25 = arith.mulf %24, %23 : vector<1x32xf32>
    %26 = math.exp %25 : vector<1x32xf32>
    %cst_19 = arith.constant 1.000000e+00 : f32
    %27 = vector.broadcast %cst_19 : f32 to vector<1x32xf32>
    %28 = arith.addf %27, %23 : vector<1x32xf32>
    %29 = arith.mulf %19, %19 : vector<1x32xf32>
    %30 = arith.subf %28, %29 : vector<1x32xf32>
    %31 = arith.mulf %26, %26 : vector<1x32xf32>
    %32 = arith.subf %30, %31 : vector<1x32xf32>
    %33 = vector.shape_cast %32 : vector<1x32xf32> to vector<1x1x32xf32>
    %cst_20 = arith.constant dense<0.000000e+00> : vector<1xf32>
    %34 = vector.multi_reduction <add>, %33, %cst_20 [1, 2] : vector<1x1x32xf32> to vector<1xf32>
    %35 = vector.shape_cast %34 : vector<1xf32> to vector<1x1x1xf32>
    %36 = vector.extract %35[0, 0, 0] : f32 from vector<1x1x1xf32>
    %cst_21 = arith.constant -5.000000e-01 : f32
    %37 = arith.mulf %cst_21, %36 : f32
    %c0_22 = arith.constant 0 : index
    %c0_23 = arith.constant 0 : index
    %c0_24 = arith.constant 0 : index
    %38 = vector.load %arg5[%c0_22, %c0_23, %c0_24] : memref<1x1x32xf32, #tpu.memory_space<vmem>>, vector<1x1x32xf32>
    %39 = vector.shape_cast %38 : vector<1x1x32xf32> to vector<1x32xf32>
    %40 = arith.mulf %26, %39 : vector<1x32xf32>
    %41 = arith.addf %19, %40 : vector<1x32xf32>
    %c0_25 = arith.constant 0 : index
    %c0_26 = arith.constant 0 : index
    %42 = vector.load %arg10[%c0_25, %c0_26] : memref<32x256xf32, #tpu.memory_space<vmem>>, vector<32x256xf32>
    %cst_27 = arith.constant dense<0.000000e+00> : vector<1x256xf32>
    %43 = tpu.matmul %41, %42, %cst_27 {dimension_numbers = #tpu.dot_dimension_numbers<[1], [0], [0], [1], [0, 0, 1, 1], [], []>} : vector<1x32xf32>, vector<32x256xf32>, vector<1x256xf32> -> vector<1x256xf32>
    %c0_28 = arith.constant 0 : index
    %c0_29 = arith.constant 0 : index
    %44 = vector.load %arg11[%c0_28, %c0_29] : memref<1x256xf32, #tpu.memory_space<vmem>>, vector<1x256xf32>
    %45 = arith.addf %43, %44 : vector<1x256xf32>
    %46 = vector.extract_strided_slice %45 {offsets = [0, 0], sizes = [1, 128], strides = [1, 1]} : vector<1x256xf32> to vector<1x128xf32>
    %47 = vector.extract_strided_slice %45 {offsets = [0, 128], sizes = [1, 128], strides = [1, 1]} : vector<1x256xf32> to vector<1x128xf32>
    %c0_30 = arith.constant 0 : index
    %c0_31 = arith.constant 0 : index
    %48 = vector.load %arg8[%c0_30, %c0_31] : memref<32x128xf32, #tpu.memory_space<vmem>>, vector<32x128xf32>
    %cst_32 = arith.constant dense<0.000000e+00> : vector<8x128xf32>
    %49 = tpu.matmul %1, %48, %cst_32 {dimension_numbers = #tpu.dot_dimension_numbers<[1], [0], [0], [1], [0, 0, 1, 1], [], []>} : vector<8x32xf32>, vector<32x128xf32>, vector<8x128xf32> -> vector<8x128xf32>
    %c0_33 = arith.constant 0 : index
    %c0_34 = arith.constant 0 : index
    %50 = vector.load %arg9[%c0_33, %c0_34] : memref<32x128xf32, #tpu.memory_space<vmem>>, vector<32x128xf32>
    %cst_35 = arith.constant dense<0.000000e+00> : vector<12x128xf32>
    %51 = tpu.matmul %5, %50, %cst_35 {dimension_numbers = #tpu.dot_dimension_numbers<[1], [0], [0], [1], [0, 0, 1, 1], [], []>} : vector<12x32xf32>, vector<32x128xf32>, vector<12x128xf32> -> vector<12x128xf32>
    %52 = vector.broadcast %46 : vector<1x128xf32> to vector<8x128xf32>
    %53 = arith.addf %49, %52 : vector<8x128xf32>
    %cst_36 = arith.constant 0.000000e+00 : f32
    %54 = vector.broadcast %cst_36 : f32 to vector<8x128xf32>
    %55 = arith.maximumf %53, %54 : vector<8x128xf32>
    %c0_37 = arith.constant 0 : index
    %c0_38 = arith.constant 0 : index
    %c0_39 = arith.constant 0 : index
    %56 = vector.load %arg12[%c0_37, %c0_38, %c0_39] : memref<1x8x128xf32, #tpu.memory_space<vmem>>, vector<1x8x128xf32>
    %57 = vector.shape_cast %56 : vector<1x8x128xf32> to vector<8x128xf32>
    %58 = vector.shape_cast %55 : vector<8x128xf32> to vector<1x8x128xf32>
    tpu.vector_store %arg12[%c0_37, %c0_38, %c0_39], %58 {strides = array<i32>} : memref<1x8x128xf32, #tpu.memory_space<vmem>>, vector<1x8x128xf32>,
    %59 = vector.broadcast %47 : vector<1x128xf32> to vector<12x128xf32>
    %60 = arith.addf %51, %59 : vector<12x128xf32>
    %cst_40 = arith.constant 0.000000e+00 : f32
    %61 = vector.broadcast %cst_40 : f32 to vector<12x128xf32>
    %62 = arith.maximumf %60, %61 : vector<12x128xf32>
    %c0_41 = arith.constant 0 : index
    %c0_42 = arith.constant 0 : index
    %c0_43 = arith.constant 0 : index
    %63 = vector.load %arg13[%c0_41, %c0_42, %c0_43] : memref<1x12x128xf32, #tpu.memory_space<vmem>>, vector<1x12x128xf32>
    %64 = vector.shape_cast %63 : vector<1x12x128xf32> to vector<12x128xf32>
    %65 = vector.shape_cast %62 : vector<12x128xf32> to vector<1x12x128xf32>
    tpu.vector_store %arg13[%c0_41, %c0_42, %c0_43], %65 {strides = array<i32>} : memref<1x12x128xf32, #tpu.memory_space<vmem>>, vector<1x12x128xf32>,
    %66 = vector.broadcast %37 : f32 to vector<1x128xf32>
    %c0_44 = arith.constant 0 : index
    %c0_45 = arith.constant 0 : index
    %c0_46 = arith.constant 0 : index
    %67 = vector.load %arg14[%c0_44, %c0_45, %c0_46] : memref<1x1x128xf32, #tpu.memory_space<vmem>>, vector<1x1x128xf32>
    %68 = vector.shape_cast %67 : vector<1x1x128xf32> to vector<1x128xf32>
    %69 = vector.shape_cast %66 : vector<1x128xf32> to vector<1x1x128xf32>
    tpu.vector_store %arg14[%c0_44, %c0_45, %c0_46], %69 {strides = array<i32>} : memref<1x1x128xf32, #tpu.memory_space<vmem>>, vector<1x1x128xf32>,
    return
  }
  func.func @transform_0(%arg0: i32) -> (i32, i32, i32) {
    %c0_i32 = arith.constant 0 : i32
    %c0_i32_0 = arith.constant 0 : i32
    %c0_i32_1 = arith.constant 0 : i32
    return %arg0, %c0_i32, %c0_i32_0 : i32, i32, i32
  }
  func.func @transform_1(%arg0: i32) -> (i32, i32, i32) {
    %c0_i32 = arith.constant 0 : i32
    %c0_i32_0 = arith.constant 0 : i32
    %c0_i32_1 = arith.constant 0 : i32
    return %arg0, %c0_i32, %c0_i32_0 : i32, i32, i32
  }
  func.func @transform_2(%arg0: i32) -> (i32, i32, i32) {
    %c0_i32 = arith.constant 0 : i32
    %c0_i32_0 = arith.constant 0 : i32
    %c0_i32_1 = arith.constant 0 : i32
    return %arg0, %c0_i32, %c0_i32_0 : i32, i32, i32
  }
  func.func @transform_3(%arg0: i32) -> (i32, i32, i32) {
    %c0_i32 = arith.constant 0 : i32
    %c0_i32_0 = arith.constant 0 : i32
    %c0_i32_1 = arith.constant 0 : i32
    return %arg0, %c0_i32, %c0_i32_0 : i32, i32, i32
  }
  func.func @transform_4(%arg0: i32) -> (i32, i32, i32) {
    %c0_i32 = arith.constant 0 : i32
    %c0_i32_0 = arith.constant 0 : i32
    %c0_i32_1 = arith.constant 0 : i32
    return %arg0, %c0_i32, %c0_i32_0 : i32, i32, i32
  }
  func.func @transform_5(%arg0: i32) -> (i32, i32) {
    %c0_i32 = arith.constant 0 : i32
    %c0_i32_0 = arith.constant 0 : i32
    %c0_i32_1 = arith.constant 0 : i32
    return %c0_i32, %c0_i32_0 : i32, i32
  }
  func.func @transform_6(%arg0: i32) -> (i32, i32) {
    %c0_i32 = arith.constant 0 : i32
    %c0_i32_0 = arith.constant 0 : i32
    %c0_i32_1 = arith.constant 0 : i32
    return %c0_i32, %c0_i32_0 : i32, i32
  }
  func.func @transform_7(%arg0: i32) -> (i32, i32) {
    %c0_i32 = arith.constant 0 : i32
    %c0_i32_0 = arith.constant 0 : i32
    %c0_i32_1 = arith.constant 0 : i32
    return %c0_i32, %c0_i32_0 : i32, i32
  }
  func.func @transform_8(%arg0: i32) -> (i32, i32) {
    %c0_i32 = arith.constant 0 : i32
    %c0_i32_0 = arith.constant 0 : i32
    %c0_i32_1 = arith.constant 0 : i32
    return %c0_i32, %c0_i32_0 : i32, i32
  }
  func.func @transform_9(%arg0: i32) -> (i32, i32) {
    %c0_i32 = arith.constant 0 : i32
    %c0_i32_0 = arith.constant 0 : i32
    %c0_i32_1 = arith.constant 0 : i32
    return %c0_i32, %c0_i32_0 : i32, i32
  }
  func.func @transform_10(%arg0: i32) -> (i32, i32) {
    %c0_i32 = arith.constant 0 : i32
    %c0_i32_0 = arith.constant 0 : i32
    %c0_i32_1 = arith.constant 0 : i32
    return %c0_i32, %c0_i32_0 : i32, i32
  }
  func.func @transform_11(%arg0: i32) -> (i32, i32, i32) {
    %c0_i32 = arith.constant 0 : i32
    %c0_i32_0 = arith.constant 0 : i32
    %c0_i32_1 = arith.constant 0 : i32
    return %arg0, %c0_i32, %c0_i32_0 : i32, i32, i32
  }
  func.func @transform_12(%arg0: i32) -> (i32, i32, i32) {
    %c0_i32 = arith.constant 0 : i32
    %c0_i32_0 = arith.constant 0 : i32
    %c0_i32_1 = arith.constant 0 : i32
    return %arg0, %c0_i32, %c0_i32_0 : i32, i32, i32
  }
  func.func @transform_13(%arg0: i32) -> (i32, i32, i32) {
    %c0_i32 = arith.constant 0 : i32
    %c0_i32_0 = arith.constant 0 : i32
    %c0_i32_1 = arith.constant 0 : i32
    return %arg0, %c0_i32, %c0_i32_0 : i32, i32, i32
  }
}

</mosaic_0001>

<llo_original>
// kernel: hier_vgnn_forward.1
$region0: #{hier_vgnn_forward.1}
  #allocation0 [shape = 'u32[]', space=smem, size = 0x4, offset = 0x4, fixed_abs, tag = 'smem constant byte address 0x4 - core index']
  #allocation1 [shape = 'u32[144,128]{1,0:T(1,128)}', space=vmem, size = 0x12000, scoped, tag = 'internal scratch']
  %s0 = inlined_call_operand.hbm [shape: f32[2,8,32], index: 0, kind: input, shape index: {}]
  %s1 = inlined_call_operand.hbm [shape: f32[2,8,32], index: 1, kind: input, shape index: {}]
  %s2 = inlined_call_operand.vmem [shape: f32[2,12,32], index: 2, kind: input, shape index: {}]
  %s3 = inlined_call_operand.vmem [shape: f32[2,12,32], index: 3, kind: input, shape index: {}]
  %s4 = inlined_call_operand.vmem [shape: f32[2,1,32], index: 4, kind: input, shape index: {}]
  %s5 = inlined_call_operand.vmem [shape: f32[64,64], index: 5, kind: input, shape index: {}]
  %s6 = inlined_call_operand.vmem [shape: f32[1,64], index: 6, kind: input, shape index: {}]
  %s7 = inlined_call_operand.hbm [shape: f32[32,128], index: 7, kind: input, shape index: {}]
  %s8 = inlined_call_operand.hbm [shape: f32[32,128], index: 8, kind: input, shape index: {}]
  %s9 = inlined_call_operand.vmem [shape: f32[32,256], index: 9, kind: input, shape index: {}]
  %s10 = inlined_call_operand.vmem [shape: f32[1,256], index: 10, kind: input, shape index: {}]
  %s11 = inlined_call_operand.hbm [shape: f32[2,8,128], index: 11, kind: output, shape index: {0}]
  %s12 = inlined_call_operand.vmem [shape: f32[2,12,128], index: 12, kind: output, shape index: {1}]
  %s13 = inlined_call_operand.vmem [shape: f32[2,1,128], index: 13, kind: output, shape index: {2}]
  %14 = xla_tuple %s11, %s12, %s13
  %s15 = sld [smem:[#allocation0]]
  $region109: #{hier_vgnn_forward.1} parent=0
    _
  %s17 = ssub.s32 1, %s15
  %s18 = scalar_select 0, %s17, %s15
  $region1: #{hier_vgnn_forward.1} parent=0
    #allocation2 [shape = 'u8[8192]{0}', space=vmem, size = 0x2000, scoped, tag = 'input window, operand 0']
    #allocation3 [shape = 's32[2]{0}', space=sflag, size = 0x8, scoped, tag = 'scoped memory for hier_vgnn_forward.1']
    #allocation4 [shape = 's32[2]{0}', space=sflag, size = 0x8, scoped, tag = 'scoped memory for hier_vgnn_forward.1']
    #allocation5 [shape = 'u8[8192]{0}', space=vmem, size = 0x2000, scoped, tag = 'input window, operand 1']
    #allocation6 [shape = 's32[2]{0}', space=sflag, size = 0x8, scoped, tag = 'scoped memory for hier_vgnn_forward.1']
    #allocation7 [shape = 'u8[16384]{0}', space=vmem, size = 0x4000, scoped, tag = 'input window, operand 7, single buffered']
    #allocation8 [shape = 'u8[16384]{0}', space=vmem, size = 0x4000, scoped, tag = 'input window, operand 8, single buffered']
    #allocation9 [shape = 's32[1]{0}', space=sflag, size = 0x4, scoped, tag = 'scoped memory for hier_vgnn_forward.1']
    #allocation10 [shape = 'u8[8192]{0}', space=vmem, size = 0x2000, scoped, tag = 'output window, operand 0']
    %19 = vsyncpa [#allocation3], 0
    %s20 = scalar_lea.sflag [#allocation3], 1
    %21 = vsyncpa %s20, 0
    %22 = vsyncpa [#allocation6], 0
    %s23 = scalar_lea.sflag [#allocation6], 1
    %24 = vsyncpa %s23, 0
    %25 = vsyncpa [#allocation9], 0
    %26 = vsyncpa [#allocation4], 0
    %s27 = scalar_lea.sflag [#allocation4], 1
    %28 = vsyncpa %s27, 0
    loop: start=0, step=1, limit=4
    $region2: #{hier_vgnn_forward.1} parent=1 // loop_pre_header
      _
    $region3: #{hier_vgnn_forward.1} parent=1 // loop_header
      %s30 = sphi 0, %s34
      %p31 = scmp.ge.s32.totalorder %s30, 4
      %s40 = sphi 0, %s42
      %s43 = sphi 0, %s40
      %s44 = sphi 0, %s43
      %s60 = sphi 0, %s44
      %s66 = sphi 0, %s68
      %s69 = sphi 0, %s66
      %s70 = sphi 0, %s69
      %s86 = sphi 0, %s70
      %s92 = sphi 0, %s94
      %s95 = sphi 0, %s92
      %s96 = sphi 0, %s95
      %s112 = sphi 0, %s96
      %s118 = sphi 0, %s120
      %s121 = sphi 0, %s118
      %s122 = sphi 0, %s121
      %s138 = sphi 0, %s122
      %s144 = sphi 0, %s146
      %s147 = sphi 0, %s144
      %s148 = sphi 0, %s147
      %s164 = sphi 0, %s148
      %s168 = sphi 0, %s168
      %s170 = sphi 0, %s168
      %s171 = sphi 0, %s170
      %s185 = sphi 0, %s171
      %s189 = sphi 0, %s189
      %s191 = sphi 0, %s189
      %s192 = sphi 0, %s191
      %s206 = sphi 0, %s192
      %s210 = sphi 0, %s210
      %s212 = sphi 0, %s210
      %s213 = sphi 0, %s212
      %s227 = sphi 0, %s213
      %s231 = sphi 0, %s231
      %s233 = sphi 0, %s231
      %s234 = sphi 0, %s233
      %s248 = sphi 0, %s234
      %s252 = sphi 0, %s252
      %s254 = sphi 0, %s252
      %s255 = sphi 0, %s254
      %s269 = sphi 0, %s255
      %s273 = sphi 0, %s273
      %s275 = sphi 0, %s273
      %s276 = sphi 0, %s275
      %s290 = sphi 0, %s276
      %s296 = sphi 0, %s298
      %s299 = sphi 0, %s296
      %s300 = sphi 0, %s299
      %s316 = sphi 0, %s300
      %s322 = sphi 0, %s324
      %s325 = sphi 0, %s322
      %s326 = sphi 0, %s325
      %s342 = sphi 0, %s326
      %s348 = sphi 0, %s350
      %s351 = sphi 0, %s348
      %s352 = sphi 0, %s351
      %s368 = sphi 0, %s352
    $region4: #{hier_vgnn_forward.1} parent=1 // loop_header_branch
      %33 = sbr.rel (%p31) target = $region8
    $region5: #{hier_vgnn_forward.1} parent=1 // loop_body
      %s35 = ssub.s32 %s30, 1
      %s36 = ssub.s32 %s30, 2
      %s37 = sadd.s32 %s30, 1
      %s38 = ssub.s32 %s30, %s37
      %p39 = scmp.eq.s32.totalorder %s38, 0
      %s41 = sadd.s32 %s40, 1
      %s42 = scalar_select %p39, %s40, %s41
      %p45 = pneg %p39
      %p46 = scmp.eq.s32.totalorder %s30, 1
      %p47 = por %p45, %p46
      %p48 = scmp.ne.s32.totalorder %s40, %s43
      %p49 = scmp.eq.s32.totalorder %s30, 0
      %p50 = por %p48, %p49
      %p51 = scmp.ne.s32.totalorder %s40, %s43
      %p52 = scmp.eq.s32.totalorder %s35, 1
      %p53 = por %p51, %p52
      %p54 = scmp.ne.s32.totalorder %s43, %s44
      %p55 = scmp.eq.s32.totalorder %s35, 0
      %p56 = por %p54, %p55
      %p57 = scmp.ne.s32.totalorder %s43, %s44
      %p58 = scmp.eq.s32.totalorder %s36, 1
      %p59 = por %p57, %p58
      %p61 = scmp.ne.s32.totalorder %s44, %s60
      %p62 = scmp.eq.s32.totalorder %s36, 0
      %p63 = por %p61, %p62
      %s64 = ssub.s32 %s30, %s37
      %p65 = scmp.eq.s32.totalorder %s64, 0
      %s67 = sadd.s32 %s66, 1
      %s68 = scalar_select %p65, %s66, %s67
      %p71 = pneg %p65
      %p72 = scmp.eq.s32.totalorder %s30, 1
      %p73 = por %p71, %p72
      %p74 = scmp.ne.s32.totalorder %s66, %s69
      %p75 = scmp.eq.s32.totalorder %s30, 0
      %p76 = por %p74, %p75
      %p77 = scmp.ne.s32.totalorder %s66, %s69
      %p78 = scmp.eq.s32.totalorder %s35, 1
      %p79 = por %p77, %p78
      %p80 = scmp.ne.s32.totalorder %s69, %s70
      %p81 = scmp.eq.s32.totalorder %s35, 0
      %p82 = por %p80, %p81
      %p83 = scmp.ne.s32.totalorder %s69, %s70
      %p84 = scmp.eq.s32.totalorder %s36, 1
      %p85 = por %p83, %p84
      %p87 = scmp.ne.s32.totalorder %s70, %s86
      %p88 = scmp.eq.s32.totalorder %s36, 0
      %p89 = por %p87, %p88
      %s90 = ssub.s32 %s30, %s37
      %p91 = scmp.eq.s32.totalorder %s90, 0
      %s93 = sadd.s32 %s92, 1
      %s94 = scalar_select %p91, %s92, %s93
      %p97 = pneg %p91
      %p98 = scmp.eq.s32.totalorder %s30, 1
      %p99 = por %p97, %p98
      %p100 = scmp.ne.s32.totalorder %s92, %s95
      %p101 = scmp.eq.s32.totalorder %s30, 0
      %p102 = por %p100, %p101
      %p103 = scmp.ne.s32.totalorder %s92, %s95
      %p104 = scmp.eq.s32.totalorder %s35, 1
      %p105 = por %p103, %p104
      %p106 = scmp.ne.s32.totalorder %s95, %s96
      %p107 = scmp.eq.s32.totalorder %s35, 0
      %p108 = por %p106, %p107
      %p109 = scmp.ne.s32.totalorder %s95, %s96
      %p110 = scmp.eq.s32.totalorder %s36, 1
      %p111 = por %p109, %p110
      %p113 = scmp.ne.s32.totalorder %s96, %s112
      %p114 = scmp.eq.s32.totalorder %s36, 0
      %p115 = por %p113, %p114
      %s116 = ssub.s32 %s30, %s37
      %p117 = scmp.eq.s32.totalorder %s116, 0
      %s119 = sadd.s32 %s118, 1
      %s120 = scalar_select %p117, %s118, %s119
      %p123 = pneg %p117
      %p124 = scmp.eq.s32.totalorder %s30, 1
      %p125 = por %p123, %p124
      %p126 = scmp.ne.s32.totalorder %s118, %s121
      %p127 = scmp.eq.s32.totalorder %s30, 0
      %p128 = por %p126, %p127
      %p129 = scmp.ne.s32.totalorder %s118, %s121
      %p130 = scmp.eq.s32.totalorder %s35, 1
      %p131 = por %p129, %p130
      %p132 = scmp.ne.s32.totalorder %s121, %s122
      %p133 = scmp.eq.s32.totalorder %s35, 0
      %p134 = por %p132, %p133
      %p135 = scmp.ne.s32.totalorder %s121, %s122
      %p136 = scmp.eq.s32.totalorder %s36, 1
      %p137 = por %p135, %p136
      %p139 = scmp.ne.s32.totalorder %s122, %s138
      %p140 = scmp.eq.s32.totalorder %s36, 0
      %p141 = por %p139, %p140
      %s142 = ssub.s32 %s30, %s37
      %p143 = scmp.eq.s32.totalorder %s142, 0
      %s145 = sadd.s32 %s144, 1
      %s146 = scalar_select %p143, %s144, %s145
      %p149 = pneg %p143
      %p150 = scmp.eq.s32.totalorder %s30, 1
      %p151 = por %p149, %p150
      %p152 = scmp.ne.s32.totalorder %s144, %s147
      %p153 = scmp.eq.s32.totalorder %s30, 0
      %p154 = por %p152, %p153
      %p155 = scmp.ne.s32.totalorder %s144, %s147
      %p156 = scmp.eq.s32.totalorder %s35, 1
      %p157 = por %p155, %p156
      %p158 = scmp.ne.s32.totalorder %s147, %s148
      %p159 = scmp.eq.s32.totalorder %s35, 0
      %p160 = por %p158, %p159
      %p161 = scmp.ne.s32.totalorder %s147, %s148
      %p162 = scmp.eq.s32.totalorder %s36, 1
      %p163 = por %p161, %p162
      %p165 = scmp.ne.s32.totalorder %s148, %s164
      %p166 = scmp.eq.s32.totalorder %s36, 0
      %p167 = por %p165, %p166
      %s169 = sadd.s32 %s168, 1
      %p172 = scmp.eq.s32.totalorder %s30, 1
      %p173 = scmp.ne.s32.totalorder %s168, %s170
      %p174 = scmp.eq.s32.totalorder %s30, 0
      %p175 = por %p173, %p174
      %p176 = scmp.ne.s32.totalorder %s168, %s170
      %p177 = scmp.eq.s32.totalorder %s35, 1
      %p178 = por %p176, %p177
      %p179 = scmp.ne.s32.totalorder %s170, %s171
      %p180 = scmp.eq.s32.totalorder %s35, 0
      %p181 = por %p179, %p180
      %p182 = scmp.ne.s32.totalorder %s170, %s171
      %p183 = scmp.eq.s32.totalorder %s36, 1
      %p184 = por %p182, %p183
      %p186 = scmp.ne.s32.totalorder %s171, %s185
      %p187 = scmp.eq.s32.totalorder %s36, 0
      %p188 = por %p186, %p187
      %s190 = sadd.s32 %s189, 1
      %p193 = scmp.eq.s32.totalorder %s30, 1
      %p194 = scmp.ne.s32.totalorder %s189, %s191
      %p195 = scmp.eq.s32.totalorder %s30, 0
      %p196 = por %p194, %p195
      %p197 = scmp.ne.s32.totalorder %s189, %s191
      %p198 = scmp.eq.s32.totalorder %s35, 1
      %p199 = por %p197, %p198
      %p200 = scmp.ne.s32.totalorder %s191, %s192
      %p201 = scmp.eq.s32.totalorder %s35, 0
      %p202 = por %p200, %p201
      %p203 = scmp.ne.s32.totalorder %s191, %s192
      %p204 = scmp.eq.s32.totalorder %s36, 1
      %p205 = por %p203, %p204
      %p207 = scmp.ne.s32.totalorder %s192, %s206
      %p208 = scmp.eq.s32.totalorder %s36, 0
      %p209 = por %p207, %p208
      %s211 = sadd.s32 %s210, 1
      %p214 = scmp.eq.s32.totalorder %s30, 1
      %p215 = scmp.ne.s32.totalorder %s210, %s212
      %p216 = scmp.eq.s32.totalorder %s30, 0
      %p217 = por %p215, %p216
      %p218 = scmp.ne.s32.totalorder %s210, %s212
      %p219 = scmp.eq.s32.totalorder %s35, 1
      %p220 = por %p218, %p219
      %p221 = scmp.ne.s32.totalorder %s212, %s213
      %p222 = scmp.eq.s32.totalorder %s35, 0
      %p223 = por %p221, %p222
      %p224 = scmp.ne.s32.totalorder %s212, %s213
      %p225 = scmp.eq.s32.totalorder %s36, 1
      %p226 = por %p224, %p225
      %p228 = scmp.ne.s32.totalorder %s213, %s227
      %p229 = scmp.eq.s32.totalorder %s36, 0
      %p230 = por %p228, %p229
      %s232 = sadd.s32 %s231, 1
      %p235 = scmp.eq.s32.totalorder %s30, 1
      %p236 = scmp.ne.s32.totalorder %s231, %s233
      %p237 = scmp.eq.s32.totalorder %s30, 0
      %p238 = por %p236, %p237
      %p239 = scmp.ne.s32.totalorder %s231, %s233
      %p240 = scmp.eq.s32.totalorder %s35, 1
      %p241 = por %p239, %p240
      %p242 = scmp.ne.s32.totalorder %s233, %s234
      %p243 = scmp.eq.s32.totalorder %s35, 0
      %p244 = por %p242, %p243
      %p245 = scmp.ne.s32.totalorder %s233, %s234
      %p246 = scmp.eq.s32.totalorder %s36, 1
      %p247 = por %p245, %p246
      %p249 = scmp.ne.s32.totalorder %s234, %s248
      %p250 = scmp.eq.s32.totalorder %s36, 0
      %p251 = por %p249, %p250
      %s253 = sadd.s32 %s252, 1
      %p256 = scmp.eq.s32.totalorder %s30, 1
      %p257 = scmp.ne.s32.totalorder %s252, %s254
      %p258 = scmp.eq.s32.totalorder %s30, 0
      %p259 = por %p257, %p258
      %p260 = scmp.ne.s32.totalorder %s252, %s254
      %p261 = scmp.eq.s32.totalorder %s35, 1
      %p262 = por %p260, %p261
      %p263 = scmp.ne.s32.totalorder %s254, %s255
      %p264 = scmp.eq.s32.totalorder %s35, 0
      %p265 = por %p263, %p264
      %p266 = scmp.ne.s32.totalorder %s254, %s255
      %p267 = scmp.eq.s32.totalorder %s36, 1
      %p268 = por %p266, %p267
      %p270 = scmp.ne.s32.totalorder %s255, %s269
      %p271 = scmp.eq.s32.totalorder %s36, 0
      %p272 = por %p270, %p271
      %s274 = sadd.s32 %s273, 1
      %p277 = scmp.eq.s32.totalorder %s30, 1
      %p278 = scmp.ne.s32.totalorder %s273, %s275
      %p279 = scmp.eq.s32.totalorder %s30, 0
      %p280 = por %p278, %p279
      %p281 = scmp.ne.s32.totalorder %s273, %s275
      %p282 = scmp.eq.s32.totalorder %s35, 1
      %p283 = por %p281, %p282
      %p284 = scmp.ne.s32.totalorder %s275, %s276
      %p285 = scmp.eq.s32.totalorder %s35, 0
      %p286 = por %p284, %p285
      %p287 = scmp.ne.s32.totalorder %s275, %s276
      %p288 = scmp.eq.s32.totalorder %s36, 1
      %p289 = por %p287, %p288
      %p291 = scmp.ne.s32.totalorder %s276, %s290
      %p292 = scmp.eq.s32.totalorder %s36, 0
      %p293 = por %p291, %p292
      %s294 = ssub.s32 %s30, %s37
      %p295 = scmp.eq.s32.totalorder %s294, 0
      %s297 = sadd.s32 %s296, 1
      %s298 = scalar_select %p295, %s296, %s297
      %p301 = pneg %p295
      %p302 = scmp.eq.s32.totalorder %s30, 1
      %p303 = por %p301, %p302
      %p304 = scmp.ne.s32.totalorder %s296, %s299
      %p305 = scmp.eq.s32.totalorder %s30, 0
      %p306 = por %p304, %p305
      %p307 = scmp.ne.s32.totalorder %s296, %s299
      %p308 = scmp.eq.s32.totalorder %s35, 1
      %p309 = por %p307, %p308
      %p310 = scmp.ne.s32.totalorder %s299, %s300
      %p311 = scmp.eq.s32.totalorder %s35, 0
      %p312 = por %p310, %p311
      %p313 = scmp.ne.s32.totalorder %s299, %s300
      %p314 = scmp.eq.s32.totalorder %s36, 1
      %p315 = por %p313, %p314
      %p317 = scmp.ne.s32.totalorder %s300, %s316
      %p318 = scmp.eq.s32.totalorder %s36, 0
      %p319 = por %p317, %p318
      %s320 = ssub.s32 %s30, %s37
      %p321 = scmp.eq.s32.totalorder %s320, 0
      %s323 = sadd.s32 %s322, 1
      %s324 = scalar_select %p321, %s322, %s323
      %p327 = pneg %p321
      %p328 = scmp.eq.s32.totalorder %s30, 1
      %p329 = por %p327, %p328
      %p330 = scmp.ne.s32.totalorder %s322, %s325
      %p331 = scmp.eq.s32.totalorder %s30, 0
      %p332 = por %p330, %p331
      %p333 = scmp.ne.s32.totalorder %s322, %s325
      %p334 = scmp.eq.s32.totalorder %s35, 1
      %p335 = por %p333, %p334
      %p336 = scmp.ne.s32.totalorder %s325, %s326
      %p337 = scmp.eq.s32.totalorder %s35, 0
      %p338 = por %p336, %p337
      %p339 = scmp.ne.s32.totalorder %s325, %s326
      %p340 = scmp.eq.s32.totalorder %s36, 1
      %p341 = por %p339, %p340
      %p343 = scmp.ne.s32.totalorder %s326, %s342
      %p344 = scmp.eq.s32.totalorder %s36, 0
      %p345 = por %p343, %p344
      %s346 = ssub.s32 %s30, %s37
      %p347 = scmp.eq.s32.totalorder %s346, 0
      %s349 = sadd.s32 %s348, 1
      %s350 = scalar_select %p347, %s348, %s349
      %p353 = pneg %p347
      %p354 = scmp.eq.s32.totalorder %s30, 1
      %p355 = por %p353, %p354
      %p356 = scmp.ne.s32.totalorder %s348, %s351
      %p357 = scmp.eq.s32.totalorder %s30, 0
      %p358 = por %p356, %p357
      %p359 = scmp.ne.s32.totalorder %s348, %s351
      %p360 = scmp.eq.s32.totalorder %s35, 1
      %p361 = por %p359, %p360
      %p362 = scmp.ne.s32.totalorder %s351, %s352
      %p363 = scmp.eq.s32.totalorder %s35, 0
      %p364 = por %p362, %p363
      %p365 = scmp.ne.s32.totalorder %s351, %s352
      %p366 = scmp.eq.s32.totalorder %s36, 1
      %p367 = por %p365, %p366
      %p369 = scmp.ne.s32.totalorder %s352, %s368
      %p370 = scmp.eq.s32.totalorder %s36, 0
      %p371 = por %p369, %p370
      %p372 = scmp.le.s32.totalorder 1, %s30
      %p373 = scmp.lt.s32.totalorder %s30, 3
      %p374 = pnand %p372, %p373
      %p375 = pneg %p374
      // Predicated region
      $region9: #{hier_vgnn_forward.1} parent=5 // pred_check
        _
      $region10: #{hier_vgnn_forward.1} parent=5 // pred_check_branch
        %377 = sbr.rel (%p374) target = $region12
      $region11: #{hier_vgnn_forward.1} parent=5 // pred_region
        %s378 = ssub.s32 %s30, 1
        // Predicated region
        $region13: #{hier_vgnn_forward.1} parent=11 // pred_check
          %p379 = pneg %p181
        $region14: #{hier_vgnn_forward.1} parent=11 // pred_check_branch
          %381 = sbr.rel (%p379) target = $region16
        $region15: #{hier_vgnn_forward.1} parent=11 // pred_region
          _
        $region16: #{hier_vgnn_forward.1} parent=11 // pred_fallthru
          _
        // Predicated region
        $region17: #{hier_vgnn_forward.1} parent=11 // pred_check
          %p382 = pneg %p202
        $region18: #{hier_vgnn_forward.1} parent=11 // pred_check_branch
          %384 = sbr.rel (%p382) target = $region20
        $region19: #{hier_vgnn_forward.1} parent=11 // pred_region
          _
        $region20: #{hier_vgnn_forward.1} parent=11 // pred_fallthru
          _
        // Predicated region
        $region21: #{hier_vgnn_forward.1} parent=11 // pred_check
          %p385 = pneg %p223
        $region22: #{hier_vgnn_forward.1} parent=11 // pred_check_branch
          %387 = sbr.rel (%p385) target = $region24
        $region23: #{hier_vgnn_forward.1} parent=11 // pred_region
          %s389 = ssub.s32 512, 512
          %390 = vsyncadd [#allocation6], %s389
          %s391 = sshll.u32 [#allocation7], 4
          %s392 = int_to_ptr.vmem [resolvable:$true] %s391
          %397 = dma.hbm_to_vmem [thread:$0]  %s7, 512, %s392, [#allocation6], 128, 128, 8
        $region24: #{hier_vgnn_forward.1} parent=11 // pred_fallthru
          _
        // Predicated region
        $region25: #{hier_vgnn_forward.1} parent=11 // pred_check
          %p398 = pneg %p244
        $region26: #{hier_vgnn_forward.1} parent=11 // pred_check_branch
          %400 = sbr.rel (%p398) target = $region28
        $region27: #{hier_vgnn_forward.1} parent=11 // pred_region
          %s402 = ssub.s32 512, 512
          %403 = vsyncadd [#allocation9], %s402
          %s404 = sshll.u32 [#allocation8], 4
          %s405 = int_to_ptr.vmem [resolvable:$true] %s404
          %410 = dma.hbm_to_vmem [thread:$0]  %s8, 512, %s405, [#allocation9], 128, 128, 8
        $region28: #{hier_vgnn_forward.1} parent=11 // pred_fallthru
          _
        // Predicated region
        $region29: #{hier_vgnn_forward.1} parent=11 // pred_check
          %p411 = pneg %p265
        $region30: #{hier_vgnn_forward.1} parent=11 // pred_check_branch
          %413 = sbr.rel (%p411) target = $region32
        $region31: #{hier_vgnn_forward.1} parent=11 // pred_region
          _
        $region32: #{hier_vgnn_forward.1} parent=11 // pred_fallthru
          _
        // Predicated region
        $region33: #{hier_vgnn_forward.1} parent=11 // pred_check
          %p414 = pneg %p286
        $region34: #{hier_vgnn_forward.1} parent=11 // pred_check_branch
          %416 = sbr.rel (%p414) target = $region36
        $region35: #{hier_vgnn_forward.1} parent=11 // pred_region
          _
        $region36: #{hier_vgnn_forward.1} parent=11 // pred_fallthru
          _
      $region12: #{hier_vgnn_forward.1} parent=5 // pred_fallthru
        _
      %p417 = scmp.lt.s32.totalorder %s30, 2
      // Predicated region
      $region37: #{hier_vgnn_forward.1} parent=5 // pred_check
        %p418 = pneg %p417
      $region38: #{hier_vgnn_forward.1} parent=5 // pred_check_branch
        %420 = sbr.rel (%p418) target = $region40
      $region39: #{hier_vgnn_forward.1} parent=5 // pred_region
        // Predicated region
        $region41: #{hier_vgnn_forward.1} parent=39 // pred_check
          %p421 = pneg %p50
        $region42: #{hier_vgnn_forward.1} parent=39 // pred_check_branch
          %423 = sbr.rel (%p421) target = $region44
        $region43: #{hier_vgnn_forward.1} parent=39 // pred_region
          %s424 = sand.u32 %s40, 1
          %s425 = scalar_lea.sflag [#allocation3], %s424
          %s426 = sand.u32 %s40, 1
          %s427 = smul.addr %s426, 8
          %s428 = scalar_lea.vmem [#allocation2], %s427
          %s430 = ssub.s32 128, 128
          %431 = vsyncadd %s425, %s430
          %s432 = smul.addr %s30, 128
          %s433 = scalar_lea.hbm %s0, %s432
          %s435 = sshll.u32 %s428, 4
          %s436 = int_to_ptr.vmem [resolvable:$true] %s435
          %438 = dma.hbm_to_vmem [thread:$0]  %s433, 128, %s436, %s425
        $region44: #{hier_vgnn_forward.1} parent=39 // pred_fallthru
          _
        // Predicated region
        $region45: #{hier_vgnn_forward.1} parent=39 // pred_check
          %p439 = pneg %p76
        $region46: #{hier_vgnn_forward.1} parent=39 // pred_check_branch
          %441 = sbr.rel (%p439) target = $region48
        $region47: #{hier_vgnn_forward.1} parent=39 // pred_region
          %s442 = sand.u32 %s30, 1
          %s443 = scalar_lea.sflag [#allocation6], %s442
          %s444 = sand.u32 %s66, 1
          %s445 = smul.addr %s444, 8
          %s446 = scalar_lea.vmem [#allocation5], %s445
          %s448 = ssub.s32 128, 128
          %449 = vsyncadd %s443, %s448
          %s450 = smul.addr %s30, 128
          %s451 = scalar_lea.hbm %s1, %s450
          %s453 = sshll.u32 %s446, 4
          %s454 = int_to_ptr.vmem [resolvable:$true] %s453
          %456 = dma.hbm_to_vmem [thread:$0]  %s451, 128, %s454, %s443
        $region48: #{hier_vgnn_forward.1} parent=39 // pred_fallthru
          _
        // Predicated region
        $region49: #{hier_vgnn_forward.1} parent=39 // pred_check
          %p457 = pneg %p102
        $region50: #{hier_vgnn_forward.1} parent=39 // pred_check_branch
          %459 = sbr.rel (%p457) target = $region52
        $region51: #{hier_vgnn_forward.1} parent=39 // pred_region
          %p460 = scmp.lt.s32.totalorder %s30, 1
          %s461 = scalar_select %p460, %s30, 1
          %s462 = smul.addr %s461, 2
          %s463 = smul.addr %s462, 8
          %s464 = scalar_lea.vmem %s2, %s463
        $region52: #{hier_vgnn_forward.1} parent=39 // pred_fallthru
          _
        // Predicated region
        $region53: #{hier_vgnn_forward.1} parent=39 // pred_check
          %p465 = pneg %p128
        $region54: #{hier_vgnn_forward.1} parent=39 // pred_check_branch
          %467 = sbr.rel (%p465) target = $region56
        $region55: #{hier_vgnn_forward.1} parent=39 // pred_region
          %p468 = scmp.lt.s32.totalorder %s30, 1
          %s469 = scalar_select %p468, %s30, 1
          %s470 = smul.addr %s469, 2
          %s471 = smul.addr %s470, 8
          %s472 = scalar_lea.vmem %s3, %s471
        $region56: #{hier_vgnn_forward.1} parent=39 // pred_fallthru
          _
        // Predicated region
        $region57: #{hier_vgnn_forward.1} parent=39 // pred_check
          %p473 = pneg %p154
        $region58: #{hier_vgnn_forward.1} parent=39 // pred_check_branch
          %475 = sbr.rel (%p473) target = $region60
        $region59: #{hier_vgnn_forward.1} parent=39 // pred_region
          %p476 = scmp.lt.s32.totalorder %s30, 1
          %s477 = scalar_select %p476, %s30, 1
          %s478 = scalar_lea.vmem %s4, %s477
        $region60: #{hier_vgnn_forward.1} parent=39 // pred_fallthru
          _
      $region40: #{hier_vgnn_forward.1} parent=5 // pred_fallthru
        _
      %p479 = scmp.le.s32.totalorder 1, %s30
      %p480 = scmp.lt.s32.totalorder %s30, 3
      %p481 = pnand %p479, %p480
      %p482 = pneg %p481
      // Predicated region
      $region61: #{hier_vgnn_forward.1} parent=5 // pred_check
        _
      $region62: #{hier_vgnn_forward.1} parent=5 // pred_check_branch
        %484 = sbr.rel (%p481) target = $region64
      $region63: #{hier_vgnn_forward.1} parent=5 // pred_region
        %s485 = ssub.s32 %s30, 1
        %s486 = sand.u32 %s43, 1
        %s487 = scalar_lea.sflag [#allocation3], %s486
        %s488 = sand.u32 %s43, 1
        %s489 = smul.addr %s488, 8
        %s490 = scalar_lea.vmem [#allocation2], %s489
        // Predicated region
        $region65: #{hier_vgnn_forward.1} parent=63 // pred_check
          %p491 = pneg %p56
        $region66: #{hier_vgnn_forward.1} parent=63 // pred_check_branch
          %493 = sbr.rel (%p491) target = $region68
        $region67: #{hier_vgnn_forward.1} parent=63 // pred_region
          %494 = dma.done %s487, 128
        $region68: #{hier_vgnn_forward.1} parent=63 // pred_fallthru
          _
        %s495 = sand.u32 %s35, 1
        %s496 = scalar_lea.sflag [#allocation6], %s495
        %s497 = sand.u32 %s69, 1
        %s498 = smul.addr %s497, 8
        %s499 = scalar_lea.vmem [#allocation5], %s498
        // Predicated region
        $region69: #{hier_vgnn_forward.1} parent=63 // pred_check
          %p500 = pneg %p82
        $region70: #{hier_vgnn_forward.1} parent=63 // pred_check_branch
          %502 = sbr.rel (%p500) target = $region72
        $region71: #{hier_vgnn_forward.1} parent=63 // pred_region
          %503 = dma.done %s496, 128
        $region72: #{hier_vgnn_forward.1} parent=63 // pred_fallthru
          _
        // Predicated region
        $region73: #{hier_vgnn_forward.1} parent=63 // pred_check
          %p504 = pneg %p223
        $region74: #{hier_vgnn_forward.1} parent=63 // pred_check_branch
          %506 = sbr.rel (%p504) target = $region76
        $region75: #{hier_vgnn_forward.1} parent=63 // pred_region
          %507 = dma.done [#allocation6], 512
        $region76: #{hier_vgnn_forward.1} parent=63 // pred_fallthru
          _
        // Predicated region
        $region77: #{hier_vgnn_forward.1} parent=63 // pred_check
          %p508 = pneg %p244
        $region78: #{hier_vgnn_forward.1} parent=63 // pred_check_branch
          %510 = sbr.rel (%p508) target = $region80
        $region79: #{hier_vgnn_forward.1} parent=63 // pred_region
          %511 = dma.done [#allocation9], 512
        $region80: #{hier_vgnn_forward.1} parent=63 // pred_fallthru
          _
        %s512 = sand.u32 %s43, 1
        %s513 = scalar_lea.sflag [#allocation3], %s512
        %s514 = sand.u32 %s43, 1
        %s515 = smul.addr %s514, 8
        %s516 = scalar_lea.vmem [#allocation2], %s515
        %p517 = pneg %p56
        %p518 = pneg %p53
        %s519 = sand.u32 %s35, 1
        %s520 = scalar_lea.sflag [#allocation6], %s519
        %s521 = sand.u32 %s69, 1
        %s522 = smul.addr %s521, 8
        %s523 = scalar_lea.vmem [#allocation5], %s522
        %p524 = pneg %p82
        %p525 = pneg %p79
        %p526 = scmp.lt.s32.totalorder %s35, 1
        %s527 = scalar_select %p526, %s35, 1
        %s528 = smul.addr %s527, 2
        %s529 = smul.addr %s528, 8
        %s530 = scalar_lea.vmem %s2, %s529
        %p531 = pneg %p108
        %p532 = pneg %p105
        %p533 = scmp.lt.s32.totalorder %s35, 1
        %s534 = scalar_select %p533, %s35, 1
        %s535 = smul.addr %s534, 2
        %s536 = smul.addr %s535, 8
        %s537 = scalar_lea.vmem %s3, %s536
        %p538 = pneg %p134
        %p539 = pneg %p131
        %p540 = scmp.lt.s32.totalorder %s35, 1
        %s541 = scalar_select %p540, %s35, 1
        %s542 = scalar_lea.vmem %s4, %s541
        %p543 = pneg %p160
        %p544 = pneg %p157
        %p545 = pneg %p181
        %p546 = pneg %p178
        %p547 = pneg %p202
        %p548 = pneg %p199
        %p549 = pneg %p223
        %p550 = pneg %p220
        %p551 = pneg %p244
        %p552 = pneg %p241
        %p553 = pneg %p265
        %p554 = pneg %p262
        %p555 = pneg %p286
        %p556 = pneg %p283
        %p557 = pneg %p312
        %p558 = pneg %p309
        %s559 = sand.u32 %s299, 1
        %s560 = scalar_lea.sflag [#allocation4], %s559
        %s561 = sand.u32 %s299, 1
        %s562 = smul.addr %s561, 8
        %s563 = scalar_lea.vmem [#allocation10], %s562
        %p564 = pneg %p338
        %p565 = pneg %p335
        %p566 = scmp.lt.s32.totalorder %s35, 1
        %s567 = scalar_select %p566, %s35, 1
        %s568 = smul.addr %s567, 2
        %s569 = smul.addr %s568, 8
        %s570 = scalar_lea.vmem %s12, %s569
        %p571 = pneg %p364
        %p572 = pneg %p361
        %p573 = scmp.lt.s32.totalorder %s35, 1
        %s574 = scalar_select %p573, %s35, 1
        %s575 = scalar_lea.vmem %s13, %s574
        %p576 = scmp.lt.s32.totalorder %s35, 1
        %s577 = scalar_select %p576, %s35, 1
        %s578 = smul.addr %s577, 2
        %s579 = smul.addr %s578, 8
        %s580 = scalar_lea.vmem %s2, %s579
        %p581 = scmp.lt.s32.totalorder %s35, 1
        %s582 = scalar_select %p581, %s35, 1
        %s583 = smul.addr %s582, 2
        %s584 = smul.addr %s583, 8
        %s585 = scalar_lea.vmem %s3, %s584
        %p586 = scmp.lt.s32.totalorder %s35, 1
        %s587 = scalar_select %p586, %s35, 1
        %s588 = scalar_lea.vmem %s4, %s587
        %p589 = scmp.lt.s32.totalorder %s35, 1
        %s590 = scalar_select %p589, %s35, 1
        %s591 = smul.addr %s590, 2
        %s592 = smul.addr %s591, 8
        %s593 = scalar_lea.vmem %s12, %s592
        %p594 = scmp.lt.s32.totalorder %s35, 1
        %s595 = scalar_select %p594, %s35, 1
        %s596 = scalar_lea.vmem %s13, %s595
        %v597 = vld [vmem:[%s490] sm:$0xff]
        %v598 = vld [vmem:[%s499] sm:$0xff]
        %v599 = vld [vmem:[%s580] sm:$0xff]
        %v600 = vld [vmem:[%s580 + $0x8] sm:$0xf]
        %v601 = vld [vmem:[%s585] sm:$0xff]
        %v602 = vld [vmem:[%s585 + $0x8] sm:$0xf]
        %v603 = vsub.f32 %v598, %v597
        %vm604 = vcmask 261120
        %v605 = vsel %vm604, %v603, 0.0
        %v606 = vrot.slane %v605, 4
        %v607 = vadd.f32 %v605, %v606
        %v608 = vrot.slane %v607, 2
        %v609 = vadd.f32 %v607, %v608
        %v610 = vrot.slane %v609, 1
        %v611 = vadd.f32 %v609, %v610
        %v612 = vsub.f32 %v601, %v599
        %v613 = vsub.f32 %v602, %v600
        %v614 = vsel %vm604, %v612, 0.0
        %vm615 = vcmask 257024
        %v616 = vsel %vm615, %v613, 0.0
        %v617 = vadd.f32 %v614, %v616
        %v618 = vrot.slane %v617, 4
        %v619 = vadd.f32 %v617, %v618
        %v620 = vrot.slane %v619, 2
        %v621 = vadd.f32 %v619, %v620
        %v622 = vrot.slane %v621, 1
        %v623 = vadd.f32 %v621, %v622
        %625 = vrot.lane.b32.xlu0 %v623, 32
        %v626 = vpop.permute.xlu0 %625
        %v628 = vsel %vm604, %v611, %v626
        %v629 = vld [vmem:[%s5] sm:$0xff]
        %v630 = vld [vmem:[%s5 + $0x8] sm:$0xff]
        %v631 = vld [vmem:[%s5 + $0x10] sm:$0xff]
        %v632 = vld [vmem:[%s5 + $0x18] sm:$0xff]
        %v633 = vld [vmem:[%s5 + $0x20] sm:$0xff]
        %v634 = vld [vmem:[%s5 + $0x28] sm:$0xff]
        %v635 = vld [vmem:[%s5 + $0x30] sm:$0xff]
        %v636 = vld [vmem:[%s5 + $0x38] sm:$0xff]
        %v637 = vld [vmem:[%s6] sm:$0x1]
        %vm638 = vcmask 523264
        %v640 = vsel %vm638, %v628, 0
        %642 = vmatprep.subr.mxu0 0.0
        %643 = vmatpush1.msra.mxu0 %v629
        %644 = vmatprep.subr.mxu0 0.0
        %645 = vmatpush1.msra.mxu0 %v630
        %646 = vmatprep.subr.mxu0 0.0
        %647 = vmatpush1.msra.mxu0 %v631
        %648 = vmatprep.subr.mxu0 0.0
        %649 = vmatpush1.msra.mxu0 %v632
        %650 = vmatprep.subr.mxu0 0.0
        %651 = vmatpush1.msra.mxu0 %v633
        %652 = vmatprep.subr.mxu0 0.0
        %653 = vmatpush1.msra.mxu0 %v634
        %654 = vmatprep.subr.mxu0 0.0
        %655 = vmatpush1.msra.mxu0 %v635
        %656 = vmatprep.subr.mxu0 0.0
        %657 = vmatpush1.msra.mxu0 %v636
        %658 = vmatprep.subr.mxu0 0.0
        %659 = vmatpush1.msra.mxu0 0.0
        %660 = vmatprep.subr.mxu0 0.0
        %661 = vmatpush1.msra.mxu0 0.0
        %662 = vmatprep.subr.mxu0 0.0
        %663 = vmatpush1.msra.mxu0 0.0
        %664 = vmatprep.subr.mxu0 0.0
        %665 = vmatpush1.msra.mxu0 0.0
        %666 = vmatprep.subr.mxu0 0.0
        %667 = vmatpush1.msra.mxu0 0.0
        %668 = vmatprep.subr.mxu0 0.0
        %669 = vmatpush1.msra.mxu0 0.0
        %670 = vmatprep.subr.mxu0 0.0
        %671 = vmatpush1.msra.mxu0 0.0
        %672 = vmatprep.subr.mxu0 0.0
        %673 = vmatpush1.msra.mxu0 0.0
        %674 = vmatprep.subr.mxu0 0.0
        %675 = vmatpush1.msra.mxu0 0.0
        %676 = vmatprep.subr.mxu0 0.0
        %677 = vmatpush1.msra.mxu0 0.0
        %678 = vmatprep.subr.mxu0 0.0
        %679 = vmatpush1.msra.mxu0 0.0
        %680 = vmatprep.subr.mxu0 0.0
        %681 = vmatpush1.msra.mxu0 0.0
        %682 = vmatprep.subr.mxu0 0.0
        %683 = vmatpush1.msra.mxu0 0.0
        %684 = vmatprep.subr.mxu0 0.0
        %685 = vmatpush1.msra.mxu0 0.0
        %686 = vmatprep.subr.mxu0 0.0
        %687 = vmatpush1.msra.mxu0 0.0
        %688 = vmatprep.subr.mxu0 0.0
        %689 = vmatpush1.msra.mxu0 0.0
        %690 = vmatprep.subr.mxu0 0.0
        %691 = vmatpush1.msra.mxu0 0.0
        %692 = vmatprep.subr.mxu0 0.0
        %693 = vmatpush1.msra.mxu0 0.0
        %694 = vmatprep.subr.mxu0 0.0
        %695 = vmatpush1.msra.mxu0 0.0
        %696 = vmatprep.subr.mxu0 0.0
        %697 = vmatpush1.msra.mxu0 0.0
        %698 = vmatprep.subr.mxu0 0.0
        %699 = vmatpush1.msra.mxu0 0.0
        %700 = vmatprep.subr.mxu0 0.0
        %701 = vmatpush1.msra.mxu0 0.0
        %702 = vmatprep.subr.mxu0 0.0
        %703 = vmatpush1.msra.mxu0 0.0
        %704 = vmatprep.subr.mxu0 0.0
        %705 = vmatpush1.msra.mxu0 0.0
        %706 = vmatprep.mubr.f32.mxu0 0.0
        %707 = vmatmul.mubr.f32.gmra.mrb[0].mxu0 %v640
        %v708 = vpop.f32.mrb[0].mxu0
        %v709 = vadd.f32 %v637, %v708
        %v710 = vpop.f32.mrb[0].mxu0
        %711 = vdwg.mxu0
        %v712 = vand.u32 2147483647, %v709
        %v713 = vsub.f32 0.0, %v712
        %v714 = vmul.f32 %v713, 0.5
        %v715 = vmul.f32 %v714, 1.442695
        %v716 = vpow.pop %v715
        %v717 = vadd.f32 %v713, 1.0
        %v718 = vmul.f32 %v709, %v709
        %720 = vrot.lane.b32.xlu0 %v718, 32
        %v721 = vpop.permute.xlu0 %720
        %v723 = vsub.f32 %v717, %v721
        %v724 = vmul.f32 %v716, %v716
        %v725 = vsub.f32 %v723, %v724
        %727 = vrot.lane.b32.xlu0 %v725, 96
        %v728 = vpop.permute.xlu0 %727
        %vm730 = vcmask 253952
        %v731 = vsel %vm730, %v728, 0.0
        %732 = vadd.xlane.f32.xlu0 %v731
        %v733 = vpop.xlane.xlu0 %732
        %v734 = vrot.slane %v733, 4
        %v735 = vadd.f32 %v733, %v734
        %v736 = vrot.slane %v735, 2
        %v737 = vadd.f32 %v735, %v736
        %v738 = vrot.slane %v737, 1
        %v739 = vadd.f32 %v737, %v738
        %s740 = vtos %v739
        %s741 = smul.f32 %s740, -0.5
        %v742 = vld [vmem:[%s588] sm:$0x1]
        %v744 = vlaneseq
        %v745 = vshrl.u32 %v744, 7
        %v746 = vsub.s32 0, %v745
        %v747 = vrot.slane %v742, %v746
        %748 = vrot.lane.b32.xlu0 %v747, 32
        %v749 = vpop.permute.xlu0 %748
        %v751 = vmul.f32 %v716, %v749
        %753 = vrot.lane.b32.xlu0 %v751, 96
        %v754 = vpop.permute.xlu0 %753
        %v756 = vadd.f32 %v709, %v754
        %v757 = vld [vmem:[%s9] sm:$0xff]
        %v758 = vld [vmem:[%s9 + $0x8] sm:$0xff]
        %v759 = vld [vmem:[%s9 + $0x10] sm:$0xff]
        %v760 = vld [vmem:[%s9 + $0x18] sm:$0xff]
        %v761 = vld [vmem:[%s9 + $0x20] sm:$0xff]
        %v762 = vld [vmem:[%s9 + $0x28] sm:$0xff]
        %v763 = vld [vmem:[%s9 + $0x30] sm:$0xff]
        %v764 = vld [vmem:[%s9 + $0x38] sm:$0xff]
        %v765 = vld [vmem:[%s10] sm:$0x3]
        %v767 = vlaneseq
        %v768 = vshrl.u32 %v767, 7
        %v769 = vsub.s32 0, %v768
        %v770 = vrot.slane %v765, %v769
        %v771 = vlaneseq
        %v772 = vshrl.u32 %v771, 7
        %v773 = vsub.s32 1, %v772
        %v774 = vrot.slane %v765, %v773
        %v778 = vsel %vm604, %v756, 0
        %780 = vmatprep.subr.mxu0 %v758
        %781 = vmatpush1.msra.mxu0 %v757
        %782 = vmatprep.subr.mxu0 %v760
        %783 = vmatpush1.msra.mxu0 %v759
        %784 = vmatprep.subr.mxu0 %v762
        %785 = vmatpush1.msra.mxu0 %v761
        %786 = vmatprep.subr.mxu0 %v764
        %787 = vmatpush1.msra.mxu0 %v763
        %788 = vmatprep.subr.mxu0 0.0
        %789 = vmatpush1.msra.mxu0 0.0
        %790 = vmatprep.subr.mxu0 0.0
        %791 = vmatpush1.msra.mxu0 0.0
        %792 = vmatprep.subr.mxu0 0.0
        %793 = vmatpush1.msra.mxu0 0.0
        %794 = vmatprep.subr.mxu0 0.0
        %795 = vmatpush1.msra.mxu0 0.0
        %796 = vmatprep.subr.mxu0 0.0
        %797 = vmatpush1.msra.mxu0 0.0
        %798 = vmatprep.subr.mxu0 0.0
        %799 = vmatpush1.msra.mxu0 0.0
        %800 = vmatprep.subr.mxu0 0.0
        %801 = vmatpush1.msra.mxu0 0.0
        %802 = vmatprep.subr.mxu0 0.0
        %803 = vmatpush1.msra.mxu0 0.0
        %804 = vmatprep.subr.mxu0 0.0
        %805 = vmatpush1.msra.mxu0 0.0
        %806 = vmatprep.subr.mxu0 0.0
        %807 = vmatpush1.msra.mxu0 0.0
        %808 = vmatprep.subr.mxu0 0.0
        %809 = vmatpush1.msra.mxu0 0.0
        %810 = vmatprep.subr.mxu0 0.0
        %811 = vmatpush1.msra.mxu0 0.0
        %812 = vmatprep.subr.mxu0 0.0
        %813 = vmatpush1.msra.mxu0 0.0
        %814 = vmatprep.subr.mxu0 0.0
        %815 = vmatpush1.msra.mxu0 0.0
        %816 = vmatprep.subr.mxu0 0.0
        %817 = vmatpush1.msra.mxu0 0.0
        %818 = vmatprep.subr.mxu0 0.0
        %819 = vmatpush1.msra.mxu0 0.0
        %820 = vmatprep.subr.mxu0 0.0
        %821 = vmatpush1.msra.mxu0 0.0
        %822 = vmatprep.subr.mxu0 0.0
        %823 = vmatpush1.msra.mxu0 0.0
        %824 = vmatprep.subr.mxu0 0.0
        %825 = vmatpush1.msra.mxu0 0.0
        %826 = vmatprep.subr.mxu0 0.0
        %827 = vmatpush1.msra.mxu0 0.0
        %828 = vmatprep.subr.mxu0 0.0
        %829 = vmatpush1.msra.mxu0 0.0
        %830 = vmatprep.subr.mxu0 0.0
        %831 = vmatpush1.msra.mxu0 0.0
        %832 = vmatprep.subr.mxu0 0.0
        %833 = vmatpush1.msra.mxu0 0.0
        %834 = vmatprep.subr.mxu0 0.0
        %835 = vmatpush1.msra.mxu0 0.0
        %836 = vmatprep.subr.mxu0 0.0
        %837 = vmatpush1.msra.mxu0 0.0
        %838 = vmatprep.subr.mxu0 0.0
        %839 = vmatpush1.msra.mxu0 0.0
        %840 = vmatprep.subr.mxu0 0.0
        %841 = vmatpush1.msra.mxu0 0.0
        %842 = vmatprep.subr.mxu0 0.0
        %843 = vmatpush1.msra.mxu0 0.0
        %844 = vmatprep.mubr.f32.mxu0 0.0
        %845 = vmatmul.mubr.f32.gmra.mrb[0].mxu0 %v778
        %v846 = vpop.f32.mrb[0].mxu0
        %v847 = vadd.f32 %v770, %v846
        %v848 = vpop.f32.mrb[0].mxu0
        %v849 = vadd.f32 %v774, %v848
        %850 = vdwg.mxu0
        %v851 = vld [vmem:[#allocation7] sm:$0xff]
        %v852 = vld [vmem:[#allocation7 + $0x8] sm:$0xff]
        %v853 = vld [vmem:[#allocation7 + $0x10] sm:$0xff]
        %v854 = vld [vmem:[#allocation7 + $0x18] sm:$0xff]
        %v855 = vld [vmem:[#allocation8] sm:$0xff]
        %v856 = vld [vmem:[#allocation8 + $0x8] sm:$0xff]
        %v857 = vld [vmem:[#allocation8 + $0x10] sm:$0xff]
        %v858 = vld [vmem:[#allocation8 + $0x18] sm:$0xff]
        %v859 = vlaneseq
        %v860 = vshrl.u32 %v859, 7
        %v861 = vsub.s32 0, %v860
        %v862 = vrot.slane %v847, %v861
        %v864 = vsel %vm604, %v597, 0
        %866 = vmatprep.subr.mxu0 0.0
        %867 = vmatpush1.msra.mxu0 %v851
        %868 = vmatprep.subr.mxu0 0.0
        %869 = vmatpush1.msra.mxu0 %v852
        %870 = vmatprep.subr.mxu0 0.0
        %871 = vmatpush1.msra.mxu0 %v853
        %872 = vmatprep.subr.mxu0 0.0
        %873 = vmatpush1.msra.mxu0 %v854
        %874 = vmatprep.subr.mxu0 0.0
        %875 = vmatpush1.msra.mxu0 0.0
        %876 = vmatprep.subr.mxu0 0.0
        %877 = vmatpush1.msra.mxu0 0.0
        %878 = vmatprep.subr.mxu0 0.0
        %879 = vmatpush1.msra.mxu0 0.0
        %880 = vmatprep.subr.mxu0 0.0
        %881 = vmatpush1.msra.mxu0 0.0
        %882 = vmatprep.subr.mxu0 0.0
        %883 = vmatpush1.msra.mxu0 0.0
        %884 = vmatprep.subr.mxu0 0.0
        %885 = vmatpush1.msra.mxu0 0.0
        %886 = vmatprep.subr.mxu0 0.0
        %887 = vmatpush1.msra.mxu0 0.0
        %888 = vmatprep.subr.mxu0 0.0
        %889 = vmatpush1.msra.mxu0 0.0
        %890 = vmatprep.subr.mxu0 0.0
        %891 = vmatpush1.msra.mxu0 0.0
        %892 = vmatprep.subr.mxu0 0.0
        %893 = vmatpush1.msra.mxu0 0.0
        %894 = vmatprep.subr.mxu0 0.0
        %895 = vmatpush1.msra.mxu0 0.0
        %896 = vmatprep.subr.mxu0 0.0
        %897 = vmatpush1.msra.mxu0 0.0
        %898 = vmatprep.subr.mxu0 0.0
        %899 = vmatpush1.msra.mxu0 0.0
        %900 = vmatprep.subr.mxu0 0.0
        %901 = vmatpush1.msra.mxu0 0.0
        %902 = vmatprep.subr.mxu0 0.0
        %903 = vmatpush1.msra.mxu0 0.0
        %904 = vmatprep.subr.mxu0 0.0
        %905 = vmatpush1.msra.mxu0 0.0
        %906 = vmatprep.subr.mxu0 0.0
        %907 = vmatpush1.msra.mxu0 0.0
        %908 = vmatprep.subr.mxu0 0.0
        %909 = vmatpush1.msra.mxu0 0.0
        %910 = vmatprep.subr.mxu0 0.0
        %911 = vmatpush1.msra.mxu0 0.0
        %912 = vmatprep.subr.mxu0 0.0
        %913 = vmatpush1.msra.mxu0 0.0
        %914 = vmatprep.subr.mxu0 0.0
        %915 = vmatpush1.msra.mxu0 0.0
        %916 = vmatprep.subr.mxu0 0.0
        %917 = vmatpush1.msra.mxu0 0.0
        %918 = vmatprep.subr.mxu0 0.0
        %919 = vmatpush1.msra.mxu0 0.0
        %920 = vmatprep.subr.mxu0 0.0
        %921 = vmatpush1.msra.mxu0 0.0
        %922 = vmatprep.subr.mxu0 0.0
        %923 = vmatpush1.msra.mxu0 0.0
        %924 = vmatprep.subr.mxu0 0.0
        %925 = vmatpush1.msra.mxu0 0.0
        %926 = vmatprep.subr.mxu0 0.0
        %927 = vmatpush1.msra.mxu0 0.0
        %928 = vmatprep.subr.mxu0 0.0
        %929 = vmatpush1.msra.mxu0 0.0
        %930 = vmatprep.mubr.f32.mxu0 0.0
        %931 = vmatmul.mubr.f32.gmra.mrb[0].mxu0 %v864
        %v932 = vpop.f32.mrb[0].mxu0
        %v933 = vadd.f32 %v862, %v932
        %v934 = vpop.f32.mrb[0].mxu0
        %935 = vdwg.mxu0
        %v936 = vmax.f32 %v933, 0.0
        %937 = vst [vmem:[%s563] sm:$0xff] %v936
        %v938 = vlaneseq
        %v939 = vshrl.u32 %v938, 7
        %v940 = vsub.s32 0, %v939
        %v941 = vrot.slane %v849, %v940
        %v943 = vsel %vm604, %v599, 0
        %v946 = vsel %vm604, %v600, 0
        %948 = vmatprep.subr.mxu0 0.0
        %949 = vmatpush1.msra.mxu0 %v855
        %950 = vmatprep.subr.mxu0 0.0
        %951 = vmatpush1.msra.mxu0 %v856
        %952 = vmatprep.subr.mxu0 0.0
        %953 = vmatpush1.msra.mxu0 %v857
        %954 = vmatprep.subr.mxu0 0.0
        %955 = vmatpush1.msra.mxu0 %v858
        %956 = vmatprep.subr.mxu0 0.0
        %957 = vmatpush1.msra.mxu0 0.0
        %958 = vmatprep.subr.mxu0 0.0
        %959 = vmatpush1.msra.mxu0 0.0
        %960 = vmatprep.subr.mxu0 0.0
        %961 = vmatpush1.msra.mxu0 0.0
        %962 = vmatprep.subr.mxu0 0.0
        %963 = vmatpush1.msra.mxu0 0.0
        %964 = vmatprep.subr.mxu0 0.0
        %965 = vmatpush1.msra.mxu0 0.0
        %966 = vmatprep.subr.mxu0 0.0
        %967 = vmatpush1.msra.mxu0 0.0
        %968 = vmatprep.subr.mxu0 0.0
        %969 = vmatpush1.msra.mxu0 0.0
        %970 = vmatprep.subr.mxu0 0.0
        %971 = vmatpush1.msra.mxu0 0.0
        %972 = vmatprep.subr.mxu0 0.0
        %973 = vmatpush1.msra.mxu0 0.0
        %974 = vmatprep.subr.mxu0 0.0
        %975 = vmatpush1.msra.mxu0 0.0
        %976 = vmatprep.subr.mxu0 0.0
        %977 = vmatpush1.msra.mxu0 0.0
        %978 = vmatprep.subr.mxu0 0.0
        %979 = vmatpush1.msra.mxu0 0.0
        %980 = vmatprep.subr.mxu0 0.0
        %981 = vmatpush1.msra.mxu0 0.0
        %982 = vmatprep.subr.mxu0 0.0
        %983 = vmatpush1.msra.mxu0 0.0
        %984 = vmatprep.subr.mxu0 0.0
        %985 = vmatpush1.msra.mxu0 0.0
        %986 = vmatprep.subr.mxu0 0.0
        %987 = vmatpush1.msra.mxu0 0.0
        %988 = vmatprep.subr.mxu0 0.0
        %989 = vmatpush1.msra.mxu0 0.0
        %990 = vmatprep.subr.mxu0 0.0
        %991 = vmatpush1.msra.mxu0 0.0
        %992 = vmatprep.subr.mxu0 0.0
        %993 = vmatpush1.msra.mxu0 0.0
        %994 = vmatprep.subr.mxu0 0.0
        %995 = vmatpush1.msra.mxu0 0.0
        %996 = vmatprep.subr.mxu0 0.0
        %997 = vmatpush1.msra.mxu0 0.0
        %998 = vmatprep.subr.mxu0 0.0
        %999 = vmatpush1.msra.mxu0 0.0
        %1000 = vmatprep.subr.mxu0 0.0
        %1001 = vmatpush1.msra.mxu0 0.0
        %1002 = vmatprep.subr.mxu0 0.0
        %1003 = vmatpush1.msra.mxu0 0.0
        %1004 = vmatprep.subr.mxu0 0.0
        %1005 = vmatpush1.msra.mxu0 0.0
        %1006 = vmatprep.subr.mxu0 0.0
        %1007 = vmatpush1.msra.mxu0 0.0
        %1008 = vmatprep.subr.mxu0 0.0
        %1009 = vmatpush1.msra.mxu0 0.0
        %1010 = vmatprep.subr.mxu0 0.0
        %1011 = vmatpush1.msra.mxu0 0.0
        %1012 = vmatprep.mubr.f32.mxu0 0.0
        %1013 = vmatmul.mubr.f32.gmra.mrb[0].mxu0 %v943
        %v1014 = vpop.f32.mrb[0].mxu0
        %v1015 = vadd.f32 %v941, %v1014
        %v1016 = vpop.f32.mrb[0].mxu0
        %1017 = vmatprep.mubr.f32.mxu0 0.0
        %1018 = vmatmul.mubr.f32.gmra.mrb[0].mxu0 %v946
        %v1019 = vpop.f32.mrb[0].mxu0
        %v1020 = vadd.f32 %v941, %v1019
        %v1021 = vpop.f32.mrb[0].mxu0
        %1022 = vdwg.mxu0
        %v1023 = vmax.f32 %v1015, 0.0
        %v1024 = vmax.f32 %v1020, 0.0
        %1025 = vst [vmem:[%s593] sm:$0xff] %v1023
        %1026 = vst [vmem:[%s593 + $0x8] sm:$0xf] %v1024
        %v1027 = vstv %s741
        %1028 = vst [vmem:[%s596] sm:$0x1] %v1027
        %s1029 = sand.u32 %s299, 1
        %s1030 = scalar_lea.sflag [#allocation4], %s1029
        %s1031 = sand.u32 %s299, 1
        %s1032 = smul.addr %s1031, 8
        %s1033 = scalar_lea.vmem [#allocation10], %s1032
        %p1034 = scmp.lt.s32.totalorder %s35, 1
        %s1035 = scalar_select %p1034, %s35, 1
        %s1036 = smul.addr %s1035, 2
        %s1037 = smul.addr %s1036, 8
        %s1038 = scalar_lea.vmem %s12, %s1037
        %p1039 = scmp.lt.s32.totalorder %s35, 1
        %s1040 = scalar_select %p1039, %s35, 1
        %s1041 = scalar_lea.vmem %s13, %s1040
        // Predicated region
        $region81: #{hier_vgnn_forward.1} parent=63 // pred_check
          %p1042 = pneg %p309
        $region82: #{hier_vgnn_forward.1} parent=63 // pred_check_branch
          %1044 = sbr.rel (%p1042) target = $region84
        $region83: #{hier_vgnn_forward.1} parent=63 // pred_region
          %s1046 = ssub.s32 128, 128
          %1047 = vsyncadd %s1030, %s1046
          %s1048 = smul.addr %s35, 128
          %s1049 = scalar_lea.hbm %s11, %s1048
          %s1051 = sshll.u32 %s1033, 4
          %s1052 = int_to_ptr.vmem [resolvable:$true] %s1051
          %1054 = dma.vmem_to_hbm [thread:$0]  %s1052, 128, %s1049, %s1030
        $region84: #{hier_vgnn_forward.1} parent=63 // pred_fallthru
          _
        // Predicated region
        $region85: #{hier_vgnn_forward.1} parent=63 // pred_check
          %p1055 = pneg %p335
        $region86: #{hier_vgnn_forward.1} parent=63 // pred_check_branch
          %1057 = sbr.rel (%p1055) target = $region88
        $region87: #{hier_vgnn_forward.1} parent=63 // pred_region
          _
        $region88: #{hier_vgnn_forward.1} parent=63 // pred_fallthru
          _
        // Predicated region
        $region89: #{hier_vgnn_forward.1} parent=63 // pred_check
          %p1058 = pneg %p361
        $region90: #{hier_vgnn_forward.1} parent=63 // pred_check_branch
          %1060 = sbr.rel (%p1058) target = $region92
        $region91: #{hier_vgnn_forward.1} parent=63 // pred_region
          _
        $region92: #{hier_vgnn_forward.1} parent=63 // pred_fallthru
          _
      $region64: #{hier_vgnn_forward.1} parent=5 // pred_fallthru
        _
      %p1061 = scmp.le.s32.totalorder 2, %s30
      // Predicated region
      $region93: #{hier_vgnn_forward.1} parent=5 // pred_check
        %p1062 = pneg %p1061
      $region94: #{hier_vgnn_forward.1} parent=5 // pred_check_branch
        %1064 = sbr.rel (%p1062) target = $region96
      $region95: #{hier_vgnn_forward.1} parent=5 // pred_region
        %s1065 = ssub.s32 %s30, 2
        // Predicated region
        $region97: #{hier_vgnn_forward.1} parent=95 // pred_check
          %p1066 = pneg %p315
        $region98: #{hier_vgnn_forward.1} parent=95 // pred_check_branch
          %1068 = sbr.rel (%p1066) target = $region100
        $region99: #{hier_vgnn_forward.1} parent=95 // pred_region
          %s1069 = sand.u32 %s300, 1
          %s1070 = scalar_lea.sflag [#allocation4], %s1069
          %s1071 = sand.u32 %s300, 1
          %s1072 = smul.addr %s1071, 8
          %s1073 = scalar_lea.vmem [#allocation10], %s1072
          %1074 = dma.done %s1070, 128
        $region100: #{hier_vgnn_forward.1} parent=95 // pred_fallthru
          _
        // Predicated region
        $region101: #{hier_vgnn_forward.1} parent=95 // pred_check
          %p1075 = pneg %p341
        $region102: #{hier_vgnn_forward.1} parent=95 // pred_check_branch
          %1077 = sbr.rel (%p1075) target = $region104
        $region103: #{hier_vgnn_forward.1} parent=95 // pred_region
          %p1078 = scmp.lt.s32.totalorder %s36, 1
          %s1079 = scalar_select %p1078, %s36, 1
          %s1080 = smul.addr %s1079, 2
          %s1081 = smul.addr %s1080, 8
          %s1082 = scalar_lea.vmem %s12, %s1081
        $region104: #{hier_vgnn_forward.1} parent=95 // pred_fallthru
          _
        // Predicated region
        $region105: #{hier_vgnn_forward.1} parent=95 // pred_check
          %p1083 = pneg %p367
        $region106: #{hier_vgnn_forward.1} parent=95 // pred_check_branch
          %1085 = sbr.rel (%p1083) target = $region108
        $region107: #{hier_vgnn_forward.1} parent=95 // pred_region
          %p1086 = scmp.lt.s32.totalorder %s36, 1
          %s1087 = scalar_select %p1086, %s36, 1
          %s1088 = scalar_lea.vmem %s13, %s1087
        $region108: #{hier_vgnn_forward.1} parent=95 // pred_fallthru
          _
      $region96: #{hier_vgnn_forward.1} parent=5 // pred_fallthru
        _
    $region6: #{hier_vgnn_forward.1} parent=1 // loop_footer
      %s34 = sadd.s32 1, %s30
    $region7: #{hier_vgnn_forward.1} parent=1 // loop_footer_branch
      %29 = sbr.rel target = $region3
    $region8: #{hier_vgnn_forward.1} parent=1 // loop_exit
      _
    %1089 = vsyncpa [#allocation3], 1
    %s1090 = scalar_lea.sflag [#allocation3], 1
    %1091 = vsyncpa %s1090, 1
    %1092 = vsyncpa [#allocation6], 1
    %s1093 = scalar_lea.sflag [#allocation6], 1
    %1094 = vsyncpa %s1093, 1
    %1095 = vsyncpa [#allocation9], 1
    %1096 = vsyncpa [#allocation4], 1
    %s1097 = scalar_lea.sflag [#allocation4], 1
    %1098 = vsyncpa %s1097, 1

</llo_original>
